<compile_context>
chip_gen: v7x
topology: tpu7x:2x2x1
jax: 0.10.0
libtpu: 0.0.40
codegen_flags: <defaults>
</compile_context>

<pallas_src>
import jax
import jax.numpy as jnp
from jax.experimental import pallas as pl
from jax.experimental.pallas import tpu as pltpu


LANES = 128      # lane width of a vreg
ROW_ALIGN = 8    # sublane count of a vreg
MAX_TILE_ROWS = 4096  # (4096, 128) f32 = 2 MiB per plane per grid step


def _round_up(a, m):
    return ((a + m - 1) // m) * m


def _make_kernel(w10, w11, b1, w2, b2, w3, b3):
    """Build an elementwise MLP kernel with the (static) params baked in."""

    def kernel(x0_ref, x1_ref, o_ref):
        # x0_ref, x1_ref, o_ref: VMEM (TR, 128) f32 -- dense batch planes.
        # fc1 + ReLU : explicit two-term VPU add (no XLU lane reduction)
        h = jnp.maximum(x0_ref[...] * w10 + x1_ref[...] * w11 + b1, 0.0)
        # fc2 + ReLU : 1x1 linear = scalar scale + bias
        h = jnp.maximum(h * w2 + b2, 0.0)
        # fc3 + Sigmoid
        o_ref[...] = jax.nn.sigmoid(h * w3 + b3)

    return kernel


def mlp_forward(x, w1, b1, w2, b2, w3, b3):
    """x: (B, 2) f32 -> (B, 1) f32, matching the PyTorch MLP forward."""
    B = x.shape[0]

    # Static module parameters -> Python floats baked into the kernel.
    w10 = float(w1[0, 0])
    w11 = float(w1[0, 1])
    bb1 = float(b1[0, 0])
    ww2 = float(w2[0, 0])
    bb2 = float(b2[0, 0])
    ww3 = float(w3[0, 0])
    bb3 = float(b3[0, 0])

    # Lay the batch out as dense (R, 128) planes. Pad B up to a multiple of
    # 8*128 so the block shapes are (8,128)-aligned and every tile is dense.
    Bp = _round_up(max(B, 1), LANES * ROW_ALIGN)
    R = Bp // LANES

    x0 = x[:, 0]
    x1 = x[:, 1]
    if Bp != B:
        pad = Bp - B
        x0 = jnp.pad(x0, (0, pad))
        x1 = jnp.pad(x1, (0, pad))
    x0 = x0.reshape(R, LANES)
    x1 = x1.reshape(R, LANES)

    # Tile rows: big tiles (<= 2 MiB per plane per step), but keep >= 2 grid
    # steps whenever possible so v7x can split the batch over its two TCs.
    if R <= ROW_ALIGN:
        tile_rows = R
    else:
        tile_rows = min(MAX_TILE_ROWS, _round_up(pl.cdiv(R, 2), ROW_ALIGN))
    grid = (pl.cdiv(R, tile_rows),)

    kernel = _make_kernel(w10, w11, bb1, ww2, bb2, ww3, bb3)

    out = pl.pallas_call(
        kernel,
        out_shape=jax.ShapeDtypeStruct((R, LANES), jnp.float32),
        grid=grid,
        in_specs=[
            pl.BlockSpec((tile_rows, LANES), lambda i: (i, 0)),  # x0 plane
            pl.BlockSpec((tile_rows, LANES), lambda i: (i, 0)),  # x1 plane
        ],
        out_specs=pl.BlockSpec((tile_rows, LANES), lambda i: (i, 0)),
        compiler_params=pltpu.CompilerParams(
            dimension_semantics=("parallel",),
        ),
    )(x0, x1)

    # (R, 128) -> (Bp,) is a contiguous (free) reshape; slice off the padding.
    return out.reshape(Bp)[:B].reshape(B, 1)


def make_params():
    # Deterministic parameters exactly as in the PyTorch __init__.
    w1 = jnp.array([[0.3, 0.3]], dtype=jnp.float32)   # fc1.weight (1, 2)
    b1 = jnp.array([[0.0]], dtype=jnp.float32)        # fc1.bias
    w2 = jnp.array([[0.2]], dtype=jnp.float32)        # fc2.weight (1, 1)
    b2 = jnp.array([[0.0]], dtype=jnp.float32)        # fc2.bias
    w3 = jnp.array([[0.1]], dtype=jnp.float32)        # fc3.weight (1, 1)
    b3 = jnp.array([[0.0]], dtype=jnp.float32)        # fc3.bias
    return w1, b1, w2, b2, w3, b3


def reference_forward(x, w1, b1, w2, b2, w3, b3):
    h = jnp.maximum(x @ w1.T + b1, 0.0)
    h = jnp.maximum(h @ w2.T + b2, 0.0)
    h = h @ w3.T + b3
    return jax.nn.sigmoid(h)


if __name__ == "__main__":
    key = jax.random.PRNGKey(0)
    # input_shape = (4, 2): batch of 4 samples, 2 features each.
    x = jax.random.normal(key, (4, 2), dtype=jnp.float32)
    w1, b1, w2, b2, w3, b3 = make_params()

    out = mlp_forward(x, w1, b1, w2, b2, w3, b3)
    out = jax.block_until_ready(out)

    ref = reference_forward(x, w1, b1, w2, b2, w3, b3)
    assert out.shape == (4, 1)
    assert jnp.allclose(out, ref, atol=1e-6, rtol=1e-6)

    print("KERNEL_OK")
</pallas_src>

<mosaic_0001>
module attributes {stable_mosaic.version = 11 : i64} {
  func.func @kernel(%arg0: i32, %arg1: memref<8x128xf32, #tpu.memory_space<vmem>>, %arg2: memref<8x128xf32, #tpu.memory_space<vmem>>, %arg3: memref<8x128xf32, #tpu.memory_space<vmem>>) attributes {dimension_semantics = [#tpu.dimension_semantics<parallel>], iteration_bounds = array<i64: 1>, scalar_prefetch = 0 : i64, scratch_operands = 0 : i64, tpu.core_type = #tpu.core_type<tc>, window_params = [{transform_indices = @transform_0, window_bounds = array<i64: 8, 128>}, {transform_indices = @transform_1, window_bounds = array<i64: 8, 128>}, {transform_indices = @transform_2, window_bounds = array<i64: 8, 128>}]} {
    %c0 = arith.constant 0 : index
    %c0_0 = arith.constant 0 : index
    %0 = vector.load %arg1[%c0, %c0_0] : memref<8x128xf32, #tpu.memory_space<vmem>>, vector<8x128xf32>
    %cst = arith.constant 3.000000e-01 : f32
    %1 = vector.broadcast %cst : f32 to vector<8x128xf32>
    %2 = arith.mulf %0, %1 : vector<8x128xf32>
    %c0_1 = arith.constant 0 : index
    %c0_2 = arith.constant 0 : index
    %3 = vector.load %arg2[%c0_1, %c0_2] : memref<8x128xf32, #tpu.memory_space<vmem>>, vector<8x128xf32>
    %cst_3 = arith.constant 3.000000e-01 : f32
    %4 = vector.broadcast %cst_3 : f32 to vector<8x128xf32>
    %5 = arith.mulf %3, %4 : vector<8x128xf32>
    %6 = arith.addf %2, %5 : vector<8x128xf32>
    %cst_4 = arith.constant 0.000000e+00 : f32
    %7 = vector.broadcast %cst_4 : f32 to vector<8x128xf32>
    %8 = arith.addf %6, %7 : vector<8x128xf32>
    %cst_5 = arith.constant 0.000000e+00 : f32
    %9 = vector.broadcast %cst_5 : f32 to vector<8x128xf32>
    %10 = arith.maximumf %8, %9 : vector<8x128xf32>
    %cst_6 = arith.constant 2.000000e-01 : f32
    %11 = vector.broadcast %cst_6 : f32 to vector<8x128xf32>
    %12 = arith.mulf %10, %11 : vector<8x128xf32>
    %cst_7 = arith.constant 0.000000e+00 : f32
    %13 = vector.broadcast %cst_7 : f32 to vector<8x128xf32>
    %14 = arith.addf %12, %13 : vector<8x128xf32>
    %cst_8 = arith.constant 0.000000e+00 : f32
    %15 = vector.broadcast %cst_8 : f32 to vector<8x128xf32>
    %16 = arith.maximumf %14, %15 : vector<8x128xf32>
    %cst_9 = arith.constant 1.000000e-01 : f32
    %17 = vector.broadcast %cst_9 : f32 to vector<8x128xf32>
    %18 = arith.mulf %16, %17 : vector<8x128xf32>
    %cst_10 = arith.constant 0.000000e+00 : f32
    %19 = vector.broadcast %cst_10 : f32 to vector<8x128xf32>
    %20 = arith.addf %18, %19 : vector<8x128xf32>
    %21 = arith.negf %20 : vector<8x128xf32>
    %22 = math.exp %21 : vector<8x128xf32>
    %cst_11 = arith.constant 1.000000e+00 : f32
    %23 = vector.broadcast %cst_11 : f32 to vector<8x128xf32>
    %24 = arith.addf %23, %22 : vector<8x128xf32>
    %25 = arith.divf %23, %24 : vector<8x128xf32>
    %c0_12 = arith.constant 0 : index
    %c0_13 = arith.constant 0 : index
    %26 = vector.load %arg3[%c0_12, %c0_13] : memref<8x128xf32, #tpu.memory_space<vmem>>, vector<8x128xf32>
    tpu.vector_store %arg3[%c0_12, %c0_13], %25 {strides = array<i32>} : memref<8x128xf32, #tpu.memory_space<vmem>>, vector<8x128xf32>,
    return
  }
  func.func @transform_0(%arg0: i32) -> (i32, i32) {
    %c0_i32 = arith.constant 0 : i32
    %c0_i32_0 = arith.constant 0 : i32
    return %arg0, %c0_i32 : i32, i32
  }
  func.func @transform_1(%arg0: i32) -> (i32, i32) {
    %c0_i32 = arith.constant 0 : i32
    %c0_i32_0 = arith.constant 0 : i32
    return %arg0, %c0_i32 : i32, i32
  }
  func.func @transform_2(%arg0: i32) -> (i32, i32) {
    %c0_i32 = arith.constant 0 : i32
    %c0_i32_0 = arith.constant 0 : i32
    return %arg0, %c0_i32 : i32, i32
  }
}

</mosaic_0001>

<llo_original>
// kernel: tpu_custom_call.1
$region0: #{tpu_custom_call.1}
  #allocation0 [shape = 'u32[]', space=smem, size = 0x4, offset = 0x4, fixed_abs, tag = 'smem constant byte address 0x4 - core index']
  #allocation1 [shape = 'u32[144,128]{1,0:T(1,128)}', space=vmem, size = 0x12000, scoped, tag = 'internal scratch']
  %s0 = inlined_call_operand.hbm [shape: f32[8,128], index: 0, kind: input, shape index: {}]
  %s1 = inlined_call_operand.hbm [shape: f32[8,128], index: 1, kind: input, shape index: {}]
  %s2 = inlined_call_operand.hbm [shape: f32[8,128], index: 2, kind: output, shape index: {}]
  %s3 = sld [smem:[#allocation0]]
  $region26: #{tpu_custom_call.1} parent=0
    _
  %s5 = ssub.s32 1, %s3
  %s6 = scalar_select 0, %s5, %s3
  $region1: #{tpu_custom_call.1} parent=0
    #allocation2 [shape = 'u8[4096]{0}', space=vmem, size = 0x1000, scoped, tag = 'input window, operand 0, single buffered']
    #allocation3 [shape = 's32[1]{0}', space=sflag, size = 0x4, scoped, tag = 'scoped memory for tpu_custom_call.1']
    #allocation4 [shape = 's32[1]{0}', space=sflag, size = 0x4, scoped, tag = 'scoped memory for tpu_custom_call.1']
    #allocation5 [shape = 'u8[4096]{0}', space=vmem, size = 0x1000, scoped, tag = 'input window, operand 1, single buffered']
    #allocation6 [shape = 's32[1]{0}', space=sflag, size = 0x4, scoped, tag = 'scoped memory for tpu_custom_call.1']
    #allocation7 [shape = 'u8[4096]{0}', space=vmem, size = 0x1000, scoped, tag = 'output window, operand 0, single buffered']
    %7 = vsyncpa [#allocation3], 0
    %8 = vsyncpa [#allocation6], 0
    %9 = vsyncpa [#allocation4], 0
    // Predicated region
    $region2: #{tpu_custom_call.1} parent=1 // pred_check
      _
    $region3: #{tpu_custom_call.1} parent=1 // pred_check_branch
      %11 = sbr.rel (0) target = $region5
    $region4: #{tpu_custom_call.1} parent=1 // pred_region
      %s13 = ssub.s32 128, 128
      %14 = vsyncadd [#allocation3], %s13
      %s16 = sshll.u32 [#allocation2], 4
      %s17 = int_to_ptr.vmem [resolvable:$true] %s16
      %19 = dma.hbm_to_vmem [thread:$0]  %s0, 128, %s17, [#allocation3]
    $region5: #{tpu_custom_call.1} parent=1 // pred_fallthru
      _
    // Predicated region
    $region6: #{tpu_custom_call.1} parent=1 // pred_check
      _
    $region7: #{tpu_custom_call.1} parent=1 // pred_check_branch
      %21 = sbr.rel (0) target = $region9
    $region8: #{tpu_custom_call.1} parent=1 // pred_region
      %s23 = ssub.s32 128, 128
      %24 = vsyncadd [#allocation6], %s23
      %s26 = sshll.u32 [#allocation5], 4
      %s27 = int_to_ptr.vmem [resolvable:$true] %s26
      %29 = dma.hbm_to_vmem [thread:$0]  %s1, 128, %s27, [#allocation6]
    $region9: #{tpu_custom_call.1} parent=1 // pred_fallthru
      _
    // Predicated region
    $region10: #{tpu_custom_call.1} parent=1 // pred_check
      _
    $region11: #{tpu_custom_call.1} parent=1 // pred_check_branch
      %31 = sbr.rel (0) target = $region13
    $region12: #{tpu_custom_call.1} parent=1 // pred_region
      %32 = dma.done [#allocation3], 128
    $region13: #{tpu_custom_call.1} parent=1 // pred_fallthru
      _
    // Predicated region
    $region14: #{tpu_custom_call.1} parent=1 // pred_check
      _
    $region15: #{tpu_custom_call.1} parent=1 // pred_check_branch
      %34 = sbr.rel (0) target = $region17
    $region16: #{tpu_custom_call.1} parent=1 // pred_region
      %35 = dma.done [#allocation6], 128
    $region17: #{tpu_custom_call.1} parent=1 // pred_fallthru
      _
    %v36 = vld [vmem:[#allocation2] sm:$0xff]
    %v37 = vmul.f32 %v36, 0.3
    %v38 = vld [vmem:[#allocation5] sm:$0xff]
    %v39 = vmul.f32 %v38, 0.3
    %v40 = vadd.f32 %v37, %v39
    %v41 = vadd.f32 %v40, 0.0
    %v42 = vmax.f32 %v41, 0.0
    %v43 = vmul.f32 %v42, 0.2
    %v44 = vadd.f32 %v43, 0.0
    %v45 = vmax.f32 %v44, 0.0
    %v46 = vmul.f32 %v45, 0.1
    %v47 = vadd.f32 %v46, 0.0
    %v48 = vxor.u32 %v47, 2147483648
    %v49 = vmul.f32 %v48, 1.442695
    %v50 = vpow.pop %v49
    %v51 = vadd.f32 %v50, 1.0
    %v52 = vrcp.pop %v51
    %v53 = vmul.f32 1.0, %v52
    %54 = vst [vmem:[#allocation7] sm:$0xff] %v53
    // Predicated region
    $region18: #{tpu_custom_call.1} parent=1 // pred_check
      _
    $region19: #{tpu_custom_call.1} parent=1 // pred_check_branch
      %56 = sbr.rel (0) target = $region21
    $region20: #{tpu_custom_call.1} parent=1 // pred_region
      %s58 = ssub.s32 128, 128
      %59 = vsyncadd [#allocation4], %s58
      %s61 = sshll.u32 [#allocation7], 4
      %s62 = int_to_ptr.vmem [resolvable:$true] %s61
      %64 = dma.vmem_to_hbm [thread:$0]  %s62, 128, %s2, [#allocation4]
    $region21: #{tpu_custom_call.1} parent=1 // pred_fallthru
      _
    // Predicated region
    $region22: #{tpu_custom_call.1} parent=1 // pred_check
      _
    $region23: #{tpu_custom_call.1} parent=1 // pred_check_branch
      %66 = sbr.rel (0) target = $region25
    $region24: #{tpu_custom_call.1} parent=1 // pred_region
      %67 = dma.done [#allocation4], 128
    $region25: #{tpu_custom_call.1} parent=1 // pred_fallthru
      _
    %68 = vsyncpa [#allocation3], 1
    %69 = vsyncpa [#allocation6], 1
    %70 = vsyncpa [#allocation4], 1

</llo_original>
